<compile_context>
chip_gen: v5e
topology: v5e:2x2
jax: 0.10.0
libtpu: 0.0.40
codegen_flags: <defaults>
</compile_context>

<pallas_src>
from functools import partial

import numpy as np

import jax
import jax.numpy as jnp
from jax.experimental import pallas as pl
from jax.experimental.pallas import tpu as pltpu  # noqa: F401  (TPU backend)


def _round_up(x, m):
    return (x + m - 1) // m * m


# -----------------------------------------------------------------------------
# Fused Pallas kernel: tanh(tanh(x @ W1 + b1) @ W2 + b2)
# -----------------------------------------------------------------------------
def _fused_two_layer_kernel(x_ref, w1_ref, b1_ref, w2_ref, b2_ref, o_ref):
    # x_ref:(Np,F0)  w1_ref:(F0,F1p)  b1_ref:(1,F1p)  w2_ref:(F1p,F2p)  b2_ref:(1,F2p)
    h = jnp.tanh(
        jnp.dot(x_ref[...], w1_ref[...], preferred_element_type=jnp.float32)
        + b1_ref[...]
    )
    o_ref[...] = jnp.tanh(
        jnp.dot(h, w2_ref[...], preferred_element_type=jnp.float32)
        + b2_ref[...]
    )


def _fused_two_layer(x_flat, wl1, bl1, wl2, bl2):
    n_pad = x_flat.shape[0]
    f2p = wl2.shape[1]
    return pl.pallas_call(
        _fused_two_layer_kernel,
        out_shape=jax.ShapeDtypeStruct((n_pad, f2p), jnp.float32),
        in_specs=[
            pl.BlockSpec(x_flat.shape, lambda: (0, 0)),
            pl.BlockSpec(wl1.shape, lambda: (0, 0)),
            pl.BlockSpec(bl1.shape, lambda: (0, 0)),
            pl.BlockSpec(wl2.shape, lambda: (0, 0)),
            pl.BlockSpec(bl2.shape, lambda: (0, 0)),
        ],
        out_specs=pl.BlockSpec((n_pad, f2p), lambda: (0, 0)),
    )(x_flat, wl1, bl1, wl2, bl2)


# -----------------------------------------------------------------------------
# HOST-SIDE weight lifting (pure numpy, runs once -- never traced / jitted).
# Fold a dilated, zero-padded Conv2d into a dense (Cin*H*W, Cout*Ho*Wo) matrix.
# Column ordering is channel-major so y.reshape(N, Cout, Ho, Wo) is NCHW.
# -----------------------------------------------------------------------------
def _lift_conv_np(w, b, hin, win, *, padding, dilation, in_features, lane_align=1):
    w = np.asarray(w, dtype=np.float32)
    b = np.asarray(b, dtype=np.float32)
    cout, cin, kh_, kw_ = w.shape
    hout = hin + 2 * padding - dilation * (kh_ - 1)
    wout = win + 2 * padding - dilation * (kw_ - 1)
    assert hout > 0 and wout > 0
    out_features = _round_up(cout * hout * wout, lane_align)
    assert in_features >= cin * hin * win

    wl = np.zeros((in_features, out_features), np.float32)
    for co in range(cout):
        for ci in range(cin):
            for kh in range(kh_):
                for kw in range(kw_):
                    for io in range(hout):
                        ih = io + dilation * kh - padding
                        if not 0 <= ih < hin:
                            continue
                        for jo in range(wout):
                            iw = jo + dilation * kw - padding
                            if not 0 <= iw < win:
                                continue
                            wl[(ci * hin + ih) * win + iw,
                               (co * hout + io) * wout + jo] += w[co, ci, kh, kw]

    bl = np.zeros((1, out_features), np.float32)
    bl[0, : cout * hout * wout] = np.repeat(b, hout * wout)
    return wl, bl, hout, wout, out_features


def prepare_lifted_params(w1, b1, w2, b2, hin, win):
    """One-time host preprocessing: conv weights -> lane-dense lifted matrices."""
    cin = int(np.asarray(w1).shape[1])
    cout2 = int(np.asarray(w2).shape[0])
    f0 = cin * hin * win
    # Layer 1: pad the intermediate feature dim to 128 lanes (zero columns).
    wl1, bl1, ho1, wo1, f1p = _lift_conv_np(
        w1, b1, hin, win, padding=1, dilation=2, in_features=f0, lane_align=128)
    # Layer 2: consumes the padded layer-1 columns (extra rows are zero), and
    # its own output dim is also lane-padded to 128 for an unmasked writeback.
    wl2, bl2, ho2, wo2, _ = _lift_conv_np(
        w2, b2, ho1, wo1, padding=1, dilation=2, in_features=f1p, lane_align=128)
    params = tuple(jnp.asarray(a) for a in (wl1, bl1, wl2, bl2))
    meta = dict(cout2=cout2, ho2=ho2, wo2=wo2)
    return params, meta


# -----------------------------------------------------------------------------
# Jitted forward: batch pad -> single fused Pallas kernel -> slice + reshape.
# -----------------------------------------------------------------------------
@partial(jax.jit, static_argnames=("cout2", "ho2", "wo2"))
def model_tanh(x, wl1, bl1, wl2, bl2, *, cout2, ho2, wo2):
    n, cin, h, w = x.shape
    f0 = cin * h * w
    n_pad = _round_up(max(n, 8), 8)                     # 10 -> 16 (sublane-dense)

    x_flat = x.reshape(n, f0).astype(jnp.float32)
    x_pad = jnp.pad(x_flat, ((0, n_pad - n), (0, 0)))   # zero rows, sliced off below

    out_pad = _fused_two_layer(x_pad, wl1, bl1, wl2, bl2)   # (n_pad, 128)
    out = out_pad[:n, : cout2 * ho2 * wo2]
    return out.reshape(n, cout2, ho2, wo2)              # NCHW


# -----------------------------------------------------------------------------
# Init + reference
# -----------------------------------------------------------------------------
def init_conv_params(key, cout, cin, k):
    """Deterministic init mirroring PyTorch Conv2d default (uniform +/- 1/sqrt(fan_in))."""
    fan_in = cin * k * k
    bound = 1.0 / jnp.sqrt(jnp.float32(fan_in))
    kw_key, kb_key = jax.random.split(key)
    w = jax.random.uniform(kw_key, (cout, cin, k, k), jnp.float32, -bound, bound)
    b = jax.random.uniform(kb_key, (cout,), jnp.float32, -bound, bound)
    return w, b


def _reference(x, w1, b1, w2, b2):
    def conv(x, w, b):
        y = jax.lax.conv_general_dilated(
            x, w, window_strides=(1, 1), padding=((1, 1), (1, 1)),
            rhs_dilation=(2, 2),
            dimension_numbers=("NCHW", "OIHW", "NCHW"))
        return jnp.tanh(y + b[None, :, None, None])
    return conv(conv(x, w1, b1), w2, b2)


if __name__ == "__main__":
    root = jax.random.PRNGKey(0)
    kx, k1, k2 = jax.random.split(root, 3)

    x = jax.random.normal(kx, (10, 1, 5, 5), jnp.float32)
    w1, b1 = init_conv_params(k1, 7, 1, 3)
    w2, b2 = init_conv_params(k2, 14, 7, 3)

    # One-time host-side lifting (outside the jitted / per-call path).
    (wl1, bl1, wl2, bl2), meta = prepare_lifted_params(
        np.asarray(w1), np.asarray(b1), np.asarray(w2), np.asarray(b2), 5, 5)

    out = jax.block_until_ready(model_tanh(x, wl1, bl1, wl2, bl2, **meta))
    assert out.shape == (10, 14, 1, 1), out.shape

    ref = jax.block_until_ready(_reference(x, w1, b1, w2, b2))
    assert jnp.allclose(out, ref, rtol=1e-4, atol=1e-5), float(
        jnp.max(jnp.abs(out - ref)))

    print("KERNEL_OK")
</pallas_src>

<mosaic_0001>
module attributes {stable_mosaic.version = 11 : i64} {
  func.func @_fused_two_layer_kernel(%arg0: memref<16x25xf32, #tpu.memory_space<vmem>>, %arg1: memref<25x128xf32, #tpu.memory_space<vmem>>, %arg2: memref<1x128xf32, #tpu.memory_space<vmem>>, %arg3: memref<128x128xf32, #tpu.memory_space<vmem>>, %arg4: memref<1x128xf32, #tpu.memory_space<vmem>>, %arg5: memref<16x128xf32, #tpu.memory_space<vmem>>) attributes {dimension_semantics = [], scalar_prefetch = 0 : i64, scratch_operands = 0 : i64, tpu.core_type = #tpu.core_type<tc>} {
    %c0 = arith.constant 0 : index
    %c0_0 = arith.constant 0 : index
    %0 = vector.load %arg0[%c0, %c0_0] : memref<16x25xf32, #tpu.memory_space<vmem>>, vector<16x25xf32>
    %c0_1 = arith.constant 0 : index
    %c0_2 = arith.constant 0 : index
    %1 = vector.load %arg1[%c0_1, %c0_2] : memref<25x128xf32, #tpu.memory_space<vmem>>, vector<25x128xf32>
    %cst = arith.constant dense<0.000000e+00> : vector<16x128xf32>
    %2 = tpu.matmul %0, %1, %cst {dimension_numbers = #tpu.dot_dimension_numbers<[1], [0], [0], [1], [0, 0, 1, 1], [], []>} : vector<16x25xf32>, vector<25x128xf32>, vector<16x128xf32> -> vector<16x128xf32>
    %c0_3 = arith.constant 0 : index
    %c0_4 = arith.constant 0 : index
    %3 = vector.load %arg2[%c0_3, %c0_4] : memref<1x128xf32, #tpu.memory_space<vmem>>, vector<1x128xf32>
    %4 = vector.broadcast %3 : vector<1x128xf32> to vector<16x128xf32>
    %5 = arith.addf %2, %4 : vector<16x128xf32>
    %6 = math.tanh %5 : vector<16x128xf32>
    %c0_5 = arith.constant 0 : index
    %c0_6 = arith.constant 0 : index
    %7 = vector.load %arg3[%c0_5, %c0_6] : memref<128x128xf32, #tpu.memory_space<vmem>>, vector<128x128xf32>
    %cst_7 = arith.constant dense<0.000000e+00> : vector<16x128xf32>
    %8 = tpu.matmul %6, %7, %cst_7 {dimension_numbers = #tpu.dot_dimension_numbers<[1], [0], [0], [1], [0, 0, 1, 1], [], []>} : vector<16x128xf32>, vector<128x128xf32>, vector<16x128xf32> -> vector<16x128xf32>
    %c0_8 = arith.constant 0 : index
    %c0_9 = arith.constant 0 : index
    %9 = vector.load %arg4[%c0_8, %c0_9] : memref<1x128xf32, #tpu.memory_space<vmem>>, vector<1x128xf32>
    %10 = vector.broadcast %9 : vector<1x128xf32> to vector<16x128xf32>
    %11 = arith.addf %8, %10 : vector<16x128xf32>
    %12 = math.tanh %11 : vector<16x128xf32>
    %c0_10 = arith.constant 0 : index
    %c0_11 = arith.constant 0 : index
    %13 = vector.load %arg5[%c0_10, %c0_11] : memref<16x128xf32, #tpu.memory_space<vmem>>, vector<16x128xf32>
    tpu.vector_store %arg5[%c0_10, %c0_11], %12 {strides = array<i32>} : memref<16x128xf32, #tpu.memory_space<vmem>>, vector<16x128xf32>,
    return
  }
}

</mosaic_0001>

<llo_original>
// kernel: model_tanh.1
$region0: #{model_tanh.1}
  #allocation0 [shape = 'u32[]', space=smem, size = 0x4, offset = 0x4, fixed_abs, tag = 'smem constant byte address 0x4 - core index']
  #allocation1 [shape = 'u32[72,128]{1,0:T(1,128)}', space=vmem, size = 0x9000, scoped, tag = 'internal scratch']
  %s0 = inlined_call_operand.vmem [shape: f32[16,25], index: 0, kind: input, shape index: {}]
  %s1 = inlined_call_operand.vmem [shape: f32[25,128], index: 1, kind: input, shape index: {}]
  %s2 = inlined_call_operand.vmem [shape: f32[1,128], index: 2, kind: input, shape index: {}]
  %s3 = inlined_call_operand.vmem [shape: f32[128,128], index: 3, kind: input, shape index: {}]
  %s4 = inlined_call_operand.vmem [shape: f32[1,128], index: 4, kind: input, shape index: {}]
  %s5 = inlined_call_operand.vmem [shape: f32[16,128], index: 5, kind: output, shape index: {}]
  %s6 = sld [smem:[#allocation0]]
  $region30: #{model_tanh.1} parent=0
    _
  %s8 = ssub.s32 1, %s6
  %s9 = scalar_select 0, %s8, %s6
  // Predicated region
  $region2: #{model_tanh.1} parent=0 // pred_check
    _
  $region3: #{model_tanh.1} parent=0 // pred_check_branch
    %11 = sbr.rel (0) target = $region5
  $region4: #{model_tanh.1} parent=0 // pred_region
    _
  $region5: #{model_tanh.1} parent=0 // pred_fallthru
    _
  // Predicated region
  $region6: #{model_tanh.1} parent=0 // pred_check
    _
  $region7: #{model_tanh.1} parent=0 // pred_check_branch
    %13 = sbr.rel (0) target = $region9
  $region8: #{model_tanh.1} parent=0 // pred_region
    _
  $region9: #{model_tanh.1} parent=0 // pred_fallthru
    _
  // Predicated region
  $region10: #{model_tanh.1} parent=0 // pred_check
    _
  $region11: #{model_tanh.1} parent=0 // pred_check_branch
    %15 = sbr.rel (0) target = $region13
  $region12: #{model_tanh.1} parent=0 // pred_region
    _
  $region13: #{model_tanh.1} parent=0 // pred_fallthru
    _
  // Predicated region
  $region14: #{model_tanh.1} parent=0 // pred_check
    _
  $region15: #{model_tanh.1} parent=0 // pred_check_branch
    %17 = sbr.rel (0) target = $region17
  $region16: #{model_tanh.1} parent=0 // pred_region
    _
  $region17: #{model_tanh.1} parent=0 // pred_fallthru
    _
  // Predicated region
  $region18: #{model_tanh.1} parent=0 // pred_check
    _
  $region19: #{model_tanh.1} parent=0 // pred_check_branch
    %19 = sbr.rel (0) target = $region21
  $region20: #{model_tanh.1} parent=0 // pred_region
    _
  $region21: #{model_tanh.1} parent=0 // pred_fallthru
    _
  %v20 = vld [vmem:[%s0] sm:$0xff]
  %v21 = vld [vmem:[%s0 + $0x8] sm:$0xff]
  %v22 = vld [vmem:[%s1] sm:$0xff]
  %v23 = vld [vmem:[%s1 + $0x8] sm:$0xff]
  %v24 = vld [vmem:[%s1 + $0x10] sm:$0xff]
  %v25 = vld [vmem:[%s1 + $0x18] sm:$0x1]
  %v26 = vld [vmem:[%s2] sm:$0x1]
  %v28 = vperm.slane %v26, 0
  %vm30 = vcmask 203776
  %v32 = vsel %vm30, %v20, 0
  %v35 = vsel %vm30, %v21, 0
  %vm37 = vcmask 1040384
  %v39 = vsel %vm37, %v25, 0
  %41 = vmatpush.msra.mxu0 0.0
  %42 = vmatpush.msra.mxu0 0.0
  %43 = vmatpush.msra.mxu0 0.0
  %44 = vmatpush.msra.mxu0 0.0
  %45 = vmatpush.msra.mxu0 0.0
  %46 = vmatpush.msra.mxu0 0.0
  %47 = vmatpush.msra.mxu0 0.0
  %48 = vmatpush.msra.mxu0 0.0
  %49 = vmatpush.msra.mxu0 0.0
  %50 = vmatpush.msra.mxu0 0.0
  %51 = vmatpush.msra.mxu0 0.0
  %52 = vmatpush.msra.mxu0 0.0
  %53 = vmatpush.msra.mxu0 %v39
  %54 = vmatpush.msra.mxu0 %v24
  %55 = vmatpush.msra.mxu0 %v23
  %56 = vmatpush.msra.mxu0 %v22
  %57 = vmatmul.f32.gmra.mxu0 %v32
  %v58 = vpop.f32.mrf.mxu0
  %v59 = vadd.f32 %v28, %v58
  %60 = vmatmul.f32.gmra.mxu0 %v35
  %v61 = vpop.f32.mrf.mxu0
  %v62 = vadd.f32 %v28, %v61
  %63 = vdwg.mxu0
  %v64 = vtanh.pop %v59
  %v65 = vtanh.pop %v62
  %v66 = vld [vmem:[%s3] sm:$0xff]
  %v67 = vld [vmem:[%s3 + $0x8] sm:$0xff]
  %v68 = vld [vmem:[%s3 + $0x10] sm:$0xff]
  %v69 = vld [vmem:[%s3 + $0x18] sm:$0xff]
  %v70 = vld [vmem:[%s3 + $0x20] sm:$0xff]
  %v71 = vld [vmem:[%s3 + $0x28] sm:$0xff]
  %v72 = vld [vmem:[%s3 + $0x30] sm:$0xff]
  %v73 = vld [vmem:[%s3 + $0x38] sm:$0xff]
  %v74 = vld [vmem:[%s3 + $0x40] sm:$0xff]
  %v75 = vld [vmem:[%s3 + $0x48] sm:$0xff]
  %v76 = vld [vmem:[%s3 + $0x50] sm:$0xff]
  %v77 = vld [vmem:[%s3 + $0x58] sm:$0xff]
  %v78 = vld [vmem:[%s3 + $0x60] sm:$0xff]
  %v79 = vld [vmem:[%s3 + $0x68] sm:$0xff]
  %v80 = vld [vmem:[%s3 + $0x70] sm:$0xff]
  %v81 = vld [vmem:[%s3 + $0x78] sm:$0xff]
  %v82 = vld [vmem:[%s4] sm:$0x1]
  %v84 = vperm.slane %v82, 0
  %86 = vmatpush.msra.mxu0 %v81
  %87 = vmatpush.msra.mxu0 %v80
  %88 = vmatpush.msra.mxu0 %v79
  %89 = vmatpush.msra.mxu0 %v78
  %90 = vmatpush.msra.mxu0 %v77
  %91 = vmatpush.msra.mxu0 %v76
  %92 = vmatpush.msra.mxu0 %v75
  %93 = vmatpush.msra.mxu0 %v74
  %94 = vmatpush.msra.mxu0 %v73
  %95 = vmatpush.msra.mxu0 %v72
  %96 = vmatpush.msra.mxu0 %v71
  %97 = vmatpush.msra.mxu0 %v70
  %98 = vmatpush.msra.mxu0 %v69
  %99 = vmatpush.msra.mxu0 %v68
  %100 = vmatpush.msra.mxu0 %v67
  %101 = vmatpush.msra.mxu0 %v66
  %102 = vmatmul.f32.gmra.mxu0 %v64
  %v103 = vpop.f32.mrf.mxu0
  %v104 = vadd.f32 %v84, %v103
  %105 = vmatmul.f32.gmra.mxu0 %v65
  %v106 = vpop.f32.mrf.mxu0
  %v107 = vadd.f32 %v84, %v106
  %108 = vdwg.mxu0
  %v109 = vtanh.pop %v104
  %v110 = vtanh.pop %v107
  %111 = vst [vmem:[%s5] sm:$0xff] %v109
  %112 = vst [vmem:[%s5 + $0x8] sm:$0xff] %v110
  // Predicated region
  $region22: #{model_tanh.1} parent=0 // pred_check
    _
  $region23: #{model_tanh.1} parent=0 // pred_check_branch
    %114 = sbr.rel (0) target = $region25
  $region24: #{model_tanh.1} parent=0 // pred_region
    _
  $region25: #{model_tanh.1} parent=0 // pred_fallthru
    _
  // Predicated region
  $region26: #{model_tanh.1} parent=0 // pred_check
    _
  $region27: #{model_tanh.1} parent=0 // pred_check_branch
    %116 = sbr.rel (0) target = $region29
  $region28: #{model_tanh.1} parent=0 // pred_region
    _
  $region29: #{model_tanh.1} parent=0 // pred_fallthru
    _

</llo_original>
